<compile_context>
chip_gen: v7x
topology: tpu7x:2x2x1
jax: 0.10.0
libtpu: 0.0.40
codegen_flags: <defaults>
</compile_context>

<pallas_src>
import jax
import jax.numpy as jnp
from jax.experimental import pallas as pl
from jax.experimental.pallas import tpu as pltpu


def _round_up(v, m):
    return (v + m - 1) // m * m


def _output_layer_kernel(x_ref, w1_ref, b1_ref, w2_ref, b2_ref, o_ref):
    # x_ref : (TB, TN, Kp)      bf16  rows = TN vertices of TB batches, K = Tin*Cin (padded)
    # w1_ref: (Kp, Hp)          bf16  FC1 weight (padded)
    # b1_ref: (1, Hp)           f32
    # w2_ref: (horizon, Hp)     f32   FC2 weight, transposed (kept f32: FLOPs tiny)
    # b2_ref: (horizon, 1)      f32
    # o_ref : (TB, horizon, TN) f32   final (B, Tout, N) layout, lane-dense in TN
    tb, tn, kp = x_ref.shape

    # FC1: one merged-K matmul over all TB*TN rows (full MXU contraction depth).
    xm = x_ref[...].reshape(tb * tn, kp)                       # layout no-op
    h = jnp.dot(xm, w1_ref[...], preferred_element_type=jnp.float32)
    h = jnp.maximum(h + b1_ref[...], 0.0)                      # (TB*TN, Hp) f32

    # FC2 as NT matmuls -> results already in (horizon, TN) orientation.
    w2 = w2_ref[...]
    b2 = b2_ref[...]
    for b in range(tb):                                        # static unroll, TB small
        hb = h[b * tn:(b + 1) * tn]                            # (TN, Hp), static slice
        out = jax.lax.dot_general(
            w2, hb,
            dimension_numbers=(((1,), (1,)), ((), ())),
            preferred_element_type=jnp.float32)                # (horizon, TN)
        o_ref[b] = (out + b2).astype(o_ref.dtype)


def prepare_output_layer_params(w1, b1, w2, b2, *, history, in_dim,
                                hidden_dim, horizon):
    """One-time weight prep (pad + transpose + cast) — hoisted out of the
    per-call path. Zero padding is exact (relu(0)=0, zero rows/cols of W
    contribute nothing)."""
    k = history * in_dim
    kp = _round_up(k, 128)
    hp = _round_up(hidden_dim, 128)
    w1p = (jnp.zeros((kp, hp), jnp.float32)
           .at[:k, :hidden_dim].set(w1.astype(jnp.float32))
           .astype(jnp.bfloat16))                               # (Kp, Hp) bf16
    b1p = (jnp.zeros((1, hp), jnp.float32)
           .at[0, :hidden_dim].set(b1.astype(jnp.float32)))     # (1, Hp)  f32
    w2t = (jnp.zeros((horizon, hp), jnp.float32)
           .at[:, :hidden_dim].set(w2.astype(jnp.float32).T))   # (Tout,Hp) f32
    b2r = b2.astype(jnp.float32).reshape(horizon, 1)            # (Tout,1)  f32
    return w1p, b1p, w2t, b2r


def _choose_tiles(batch, n_pad):
    """Fat, lane-aligned tiles (~512-1024 rows/step); keep >=2 grid points
    when possible so both v7x TensorCores get work."""
    tn = min(n_pad, 512)                      # multiple of 128 (n_pad is)
    tb = max(1, min(batch, 1024 // tn))
    while batch % tb:                         # keep batch grid exact
        tb -= 1
    if (batch // tb) * pl.cdiv(n_pad, tn) < 2:
        if tb > 1:                            # split along batch
            tb = max(1, tb // 2)
            while batch % tb:
                tb -= 1
        elif n_pad > 128:                     # split along N
            tn = max(128, (n_pad // 2) // 128 * 128)
    return tb, tn


@jax.jit
def output_layer_forward(x, w1p, b1p, w2t, b2r):
    """Forward pass matching the PyTorch output_layer.

    Args:
      x: (B, Tin, N, Cin) float32
      w1p, b1p, w2t, b2r: outputs of prepare_output_layer_params.
    Returns:
      (B, horizon, N) float32
    """
    B, Tin, N, Cin = x.shape
    K = Tin * Cin
    Kp, Hp = w1p.shape
    horizon = w2t.shape[0]
    Np = _round_up(N, 128)

    # Fused permute + reshape + bf16 cast + zero pad: one mem-bound pass over x.
    x_p = jnp.transpose(x, (0, 2, 1, 3)).reshape(B, N, K).astype(jnp.bfloat16)
    x_p = jnp.pad(x_p, ((0, 0), (0, Np - N), (0, Kp - K)))

    TB, TN = _choose_tiles(B, Np)
    grid = (B // TB, pl.cdiv(Np, TN))

    flops = 2 * B * Np * Hp * (Kp + horizon)
    bytes_accessed = (x_p.size * 2 + w1p.size * 2 + b1p.size * 4
                      + w2t.size * 4 + b2r.size * 4 + B * horizon * Np * 4)

    # VMEM budget: double-buffered streaming blocks + double-buffered resident
    # weights + f32 intermediates; capped well under v7x's 64 MiB.
    vmem_need = (2 * (TB * TN * Kp * 2 + TB * horizon * TN * 4)
                 + 2 * (Kp * Hp * 2 + Hp * 4 + horizon * Hp * 4 + horizon * 4)
                 + 2 * TB * TN * Hp * 4)
    vmem_limit = int(min(32 * 1024 * 1024,
                         max(4 * vmem_need, 16 * 1024 * 1024)))

    out = pl.pallas_call(
        _output_layer_kernel,
        out_shape=jax.ShapeDtypeStruct((B, horizon, Np), jnp.float32),
        grid=grid,
        in_specs=[
            # streaming activation tile (lane dim = Kp, multiple of 128)
            pl.BlockSpec((TB, TN, Kp), lambda b, n: (b, n, 0)),
            # weights / biases: VMEM-resident across the whole grid
            pl.BlockSpec((Kp, Hp), lambda b, n: (0, 0)),
            pl.BlockSpec((1, Hp), lambda b, n: (0, 0)),
            pl.BlockSpec((horizon, Hp), lambda b, n: (0, 0)),
            pl.BlockSpec((horizon, 1), lambda b, n: (0, 0)),
        ],
        out_specs=pl.BlockSpec((TB, horizon, TN), lambda b, n: (b, 0, n)),
        compiler_params=pltpu.CompilerParams(
            dimension_semantics=("parallel", "parallel"),
            vmem_limit_bytes=vmem_limit),
        cost_estimate=pl.CostEstimate(
            flops=flops, transcendentals=0, bytes_accessed=bytes_accessed),
    )(x_p, w1p, b1p, w2t, b2r)

    # Slice off the lane padding of the N axis (tiny, mem-bound).
    return out[:, :, :N]


def _reference_forward(x, w1, b1, w2, b2):
    B, Tin, N, Cin = x.shape
    x_p = jnp.transpose(x, (0, 2, 1, 3)).reshape(B, N, Tin * Cin)
    h = jnp.maximum(x_p @ w1 + b1, 0.0)
    o = h @ w2 + b2
    return jnp.transpose(o, (0, 2, 1))


if __name__ == "__main__":
    key = jax.random.PRNGKey(0)

    configs = [
        # (B, history, N, in_dim, hidden_dim, horizon)
        (2, 8, 16, 4, 32, 12),
        (3, 4, 20, 3, 48, 6),   # odd batch / non-aligned N: exercises padding paths
    ]
    for cfg in configs:
        B, history, N, in_dim, hidden_dim, horizon = cfg
        key, kx, kw1, kb1, kw2, kb2 = jax.random.split(key, 6)

        x = jax.random.normal(kx, (B, history, N, in_dim), dtype=jnp.float32)
        # Linear weights stored transposed: (in_features, out_features).
        w1 = jax.random.normal(kw1, (history * in_dim, hidden_dim),
                               dtype=jnp.float32) * 0.1
        b1 = jax.random.normal(kb1, (hidden_dim,), dtype=jnp.float32) * 0.1
        w2 = jax.random.normal(kw2, (hidden_dim, horizon),
                               dtype=jnp.float32) * 0.1
        b2 = jax.random.normal(kb2, (horizon,), dtype=jnp.float32) * 0.1

        params = prepare_output_layer_params(
            w1, b1, w2, b2, history=history, in_dim=in_dim,
            hidden_dim=hidden_dim, horizon=horizon)

        out = jax.block_until_ready(output_layer_forward(x, *params))
        ref = _reference_forward(x, w1, b1, w2, b2)

        assert out.shape == (B, horizon, N), (cfg, out.shape)
        # bf16 MXU inputs for FC1 with f32 accumulation (FC2 kept f32).
        assert jnp.allclose(out, ref, atol=2e-2, rtol=2e-2), \
            f"mismatch vs reference for config {cfg}"

    print("KERNEL_OK")
</pallas_src>

<mosaic_0001>
module attributes {stable_mosaic.version = 11 : i64} {
  func.func @_output_layer_kernel(%arg0: i32, %arg1: i32, %arg2: memref<1x128x128xbf16, #tpu.memory_space<vmem>>, %arg3: memref<128x128xbf16, #tpu.memory_space<vmem>>, %arg4: memref<1x128xf32, #tpu.memory_space<vmem>>, %arg5: memref<12x128xf32, #tpu.memory_space<vmem>>, %arg6: memref<12x1xf32, #tpu.memory_space<vmem>>, %arg7: memref<1x12x128xf32, #tpu.memory_space<vmem>>) attributes {dimension_semantics = [#tpu.dimension_semantics<parallel>, #tpu.dimension_semantics<parallel>], iteration_bounds = array<i64: 2, 1>, scalar_prefetch = 0 : i64, scratch_operands = 0 : i64, tpu.core_type = #tpu.core_type<tc>, window_params = [{transform_indices = @transform_0, window_bounds = array<i64: 1, 128, 128>}, {pipeline_mode = #tpu.pipeline_mode<synchronous>, transform_indices = @transform_1, window_bounds = array<i64: 128, 128>}, {pipeline_mode = #tpu.pipeline_mode<synchronous>, transform_indices = @transform_2, window_bounds = array<i64: 1, 128>}, {pipeline_mode = #tpu.pipeline_mode<synchronous>, transform_indices = @transform_3, window_bounds = array<i64: 12, 128>}, {pipeline_mode = #tpu.pipeline_mode<synchronous>, transform_indices = @transform_4, window_bounds = array<i64: 12, 1>}, {transform_indices = @transform_5, window_bounds = array<i64: 1, 12, 128>}]} {
    %c0 = arith.constant 0 : index
    %c0_0 = arith.constant 0 : index
    %c0_1 = arith.constant 0 : index
    %0 = vector.load %arg2[%c0, %c0_0, %c0_1] : memref<1x128x128xbf16, #tpu.memory_space<vmem>>, vector<1x128x128xbf16>
    %1 = vector.shape_cast %0 : vector<1x128x128xbf16> to vector<128x128xbf16>
    %c0_2 = arith.constant 0 : index
    %c0_3 = arith.constant 0 : index
    %2 = vector.load %arg3[%c0_2, %c0_3] : memref<128x128xbf16, #tpu.memory_space<vmem>>, vector<128x128xbf16>
    %cst = arith.constant dense<0.000000e+00> : vector<128x128xf32>
    %3 = tpu.matmul %1, %2, %cst {dimension_numbers = #tpu.dot_dimension_numbers<[1], [0], [0], [1], [0, 0, 1, 1], [], []>} : vector<128x128xbf16>, vector<128x128xbf16>, vector<128x128xf32> -> vector<128x128xf32>
    %c0_4 = arith.constant 0 : index
    %c0_5 = arith.constant 0 : index
    %4 = vector.load %arg4[%c0_4, %c0_5] : memref<1x128xf32, #tpu.memory_space<vmem>>, vector<1x128xf32>
    %5 = vector.broadcast %4 : vector<1x128xf32> to vector<128x128xf32>
    %6 = arith.addf %3, %5 : vector<128x128xf32>
    %cst_6 = arith.constant 0.000000e+00 : f32
    %7 = vector.broadcast %cst_6 : f32 to vector<128x128xf32>
    %8 = arith.maximumf %6, %7 : vector<128x128xf32>
    %c0_7 = arith.constant 0 : index
    %c0_8 = arith.constant 0 : index
    %9 = vector.load %arg5[%c0_7, %c0_8] : memref<12x128xf32, #tpu.memory_space<vmem>>, vector<12x128xf32>
    %c0_9 = arith.constant 0 : index
    %c0_10 = arith.constant 0 : index
    %10 = vector.load %arg6[%c0_9, %c0_10] : memref<12x1xf32, #tpu.memory_space<vmem>>, vector<12x1xf32>
    %cst_11 = arith.constant dense<0.000000e+00> : vector<12x128xf32>
    %11 = tpu.matmul %9, %8, %cst_11 {dimension_numbers = #tpu.dot_dimension_numbers<[1], [1], [0], [0], [0, 0, 1, 0], [], []>} : vector<12x128xf32>, vector<128x128xf32>, vector<12x128xf32> -> vector<12x128xf32>
    %12 = vector.broadcast %10 : vector<12x1xf32> to vector<12x128xf32>
    %13 = arith.addf %11, %12 : vector<12x128xf32>
    %c0_12 = arith.constant 0 : index
    %c0_13 = arith.constant 0 : index
    %c0_14 = arith.constant 0 : index
    %14 = vector.load %arg7[%c0_12, %c0_13, %c0_14] : memref<1x12x128xf32, #tpu.memory_space<vmem>>, vector<1x12x128xf32>
    %15 = vector.shape_cast %14 : vector<1x12x128xf32> to vector<12x128xf32>
    %16 = vector.shape_cast %13 : vector<12x128xf32> to vector<1x12x128xf32>
    tpu.vector_store %arg7[%c0_12, %c0_13, %c0_14], %16 {strides = array<i32>} : memref<1x12x128xf32, #tpu.memory_space<vmem>>, vector<1x12x128xf32>,
    return
  }
  func.func @transform_0(%arg0: i32, %arg1: i32) -> (i32, i32, i32) {
    %c0_i32 = arith.constant 0 : i32
    %c0_i32_0 = arith.constant 0 : i32
    return %arg0, %arg1, %c0_i32 : i32, i32, i32
  }
  func.func @transform_1(%arg0: i32, %arg1: i32) -> (i32, i32) {
    %c0_i32 = arith.constant 0 : i32
    %c0_i32_0 = arith.constant 0 : i32
    %c0_i32_1 = arith.constant 0 : i32
    return %c0_i32, %c0_i32_0 : i32, i32
  }
  func.func @transform_2(%arg0: i32, %arg1: i32) -> (i32, i32) {
    %c0_i32 = arith.constant 0 : i32
    %c0_i32_0 = arith.constant 0 : i32
    %c0_i32_1 = arith.constant 0 : i32
    return %c0_i32, %c0_i32_0 : i32, i32
  }
  func.func @transform_3(%arg0: i32, %arg1: i32) -> (i32, i32) {
    %c0_i32 = arith.constant 0 : i32
    %c0_i32_0 = arith.constant 0 : i32
    %c0_i32_1 = arith.constant 0 : i32
    return %c0_i32, %c0_i32_0 : i32, i32
  }
  func.func @transform_4(%arg0: i32, %arg1: i32) -> (i32, i32) {
    %c0_i32 = arith.constant 0 : i32
    %c0_i32_0 = arith.constant 0 : i32
    %c0_i32_1 = arith.constant 0 : i32
    return %c0_i32, %c0_i32_0 : i32, i32
  }
  func.func @transform_5(%arg0: i32, %arg1: i32) -> (i32, i32, i32) {
    %c0_i32 = arith.constant 0 : i32
    %c0_i32_0 = arith.constant 0 : i32
    return %arg0, %c0_i32, %arg1 : i32, i32, i32
  }
}

</mosaic_0001>

<llo_original>
// kernel: output_layer_forward.1
$region0: #{output_layer_forward.1}
  #allocation0 [shape = 'u32[]', space=smem, size = 0x4, offset = 0x4, fixed_abs, tag = 'smem constant byte address 0x4 - core index']
  #allocation1 [shape = 'u32[144,128]{1,0:T(1,128)}', space=vmem, size = 0x12000, scoped, tag = 'internal scratch']
  %s0 = inlined_call_operand.vmem [shape: bf16[2,128,128], index: 0, kind: input, shape index: {}]
  %s1 = inlined_call_operand.vmem [shape: bf16[128,128], index: 1, kind: input, shape index: {}]
  %s2 = inlined_call_operand.vmem [shape: f32[1,128], index: 2, kind: input, shape index: {}]
  %s3 = inlined_call_operand.vmem [shape: f32[12,128], index: 3, kind: input, shape index: {}]
  %s4 = inlined_call_operand.vmem [shape: f32[12,1], index: 4, kind: input, shape index: {}]
  %s5 = inlined_call_operand.vmem [shape: f32[2,12,128], index: 5, kind: output, shape index: {}]
  %s6 = sld [smem:[#allocation0]]
  $region53: #{output_layer_forward.1} parent=0
    _
  %s8 = ssub.s32 1, %s6
  %s9 = scalar_select 0, %s8, %s6
  loop: start=0, step=1, limit=4
  $region2: #{output_layer_forward.1} parent=0 // loop_pre_header
    _
  $region3: #{output_layer_forward.1} parent=0 // loop_header
    %s11 = sphi 0, %s15
    %p12 = scmp.ge.s32.totalorder %s11, 4
    %s18 = sphi 0, %s30
    %s19 = sphi 0, %s26
    %s20 = sphi 0, %s18
    %s21 = sphi 0, %s19
    %s22 = sphi 0, %s20
    %s23 = sphi 0, %s21
    %s35 = sphi 0, %s37
    %s38 = sphi 0, %s35
    %s39 = sphi 0, %s38
    %s55 = sphi 0, %s39
    %s59 = sphi 0, %s59
    %s61 = sphi 0, %s59
    %s62 = sphi 0, %s61
    %s76 = sphi 0, %s62
    %s80 = sphi 0, %s80
    %s82 = sphi 0, %s80
    %s83 = sphi 0, %s82
    %s97 = sphi 0, %s83
    %s101 = sphi 0, %s101
    %s103 = sphi 0, %s101
    %s104 = sphi 0, %s103
    %s118 = sphi 0, %s104
    %s122 = sphi 0, %s122
    %s124 = sphi 0, %s122
    %s125 = sphi 0, %s124
    %s139 = sphi 0, %s125
    %s147 = sphi 0, %s149
    %s150 = sphi 0, %s147
    %s151 = sphi 0, %s150
    %s167 = sphi 0, %s151
  $region4: #{output_layer_forward.1} parent=0 // loop_header_branch
    %14 = sbr.rel (%p12) target = $region8
  $region5: #{output_layer_forward.1} parent=0 // loop_body
    %s16 = ssub.s32 %s11, 1
    %s17 = ssub.s32 %s11, 2
    %s24 = sadd.s32 1, %s19
    %p25 = scmp.ge.s32.totalorder %s24, 1
    %s26 = scalar_select %p25, 0, %s24
    %s27 = sadd.s32 1, %s18
    %s28 = scalar_select %p25, %s27, %s18
    %p29 = scmp.ge.s32.totalorder %s28, 2
    %s30 = scalar_select %p29, 0, %s28
    %s31 = ssub.s32 %s18, %s30
    %s32 = ssub.s32 %s19, %s26
    %s33 = sor.u32 %s31, %s32
    %p34 = scmp.eq.s32.totalorder %s33, 0
    %s36 = sadd.s32 %s35, 1
    %s37 = scalar_select %p34, %s35, %s36
    %p40 = pneg %p34
    %p41 = scmp.eq.s32.totalorder %s11, 1
    %p42 = por %p40, %p41
    %p43 = scmp.ne.s32.totalorder %s35, %s38
    %p44 = scmp.eq.s32.totalorder %s11, 0
    %p45 = por %p43, %p44
    %p46 = scmp.ne.s32.totalorder %s35, %s38
    %p47 = scmp.eq.s32.totalorder %s16, 1
    %p48 = por %p46, %p47
    %p49 = scmp.ne.s32.totalorder %s38, %s39
    %p50 = scmp.eq.s32.totalorder %s16, 0
    %p51 = por %p49, %p50
    %p52 = scmp.ne.s32.totalorder %s38, %s39
    %p53 = scmp.eq.s32.totalorder %s17, 1
    %p54 = por %p52, %p53
    %p56 = scmp.ne.s32.totalorder %s39, %s55
    %p57 = scmp.eq.s32.totalorder %s17, 0
    %p58 = por %p56, %p57
    %s60 = sadd.s32 %s59, 1
    %p63 = scmp.eq.s32.totalorder %s11, 1
    %p64 = scmp.ne.s32.totalorder %s59, %s61
    %p65 = scmp.eq.s32.totalorder %s11, 0
    %p66 = por %p64, %p65
    %p67 = scmp.ne.s32.totalorder %s59, %s61
    %p68 = scmp.eq.s32.totalorder %s16, 1
    %p69 = por %p67, %p68
    %p70 = scmp.ne.s32.totalorder %s61, %s62
    %p71 = scmp.eq.s32.totalorder %s16, 0
    %p72 = por %p70, %p71
    %p73 = scmp.ne.s32.totalorder %s61, %s62
    %p74 = scmp.eq.s32.totalorder %s17, 1
    %p75 = por %p73, %p74
    %p77 = scmp.ne.s32.totalorder %s62, %s76
    %p78 = scmp.eq.s32.totalorder %s17, 0
    %p79 = por %p77, %p78
    %s81 = sadd.s32 %s80, 1
    %p84 = scmp.eq.s32.totalorder %s11, 1
    %p85 = scmp.ne.s32.totalorder %s80, %s82
    %p86 = scmp.eq.s32.totalorder %s11, 0
    %p87 = por %p85, %p86
    %p88 = scmp.ne.s32.totalorder %s80, %s82
    %p89 = scmp.eq.s32.totalorder %s16, 1
    %p90 = por %p88, %p89
    %p91 = scmp.ne.s32.totalorder %s82, %s83
    %p92 = scmp.eq.s32.totalorder %s16, 0
    %p93 = por %p91, %p92
    %p94 = scmp.ne.s32.totalorder %s82, %s83
    %p95 = scmp.eq.s32.totalorder %s17, 1
    %p96 = por %p94, %p95
    %p98 = scmp.ne.s32.totalorder %s83, %s97
    %p99 = scmp.eq.s32.totalorder %s17, 0
    %p100 = por %p98, %p99
    %s102 = sadd.s32 %s101, 1
    %p105 = scmp.eq.s32.totalorder %s11, 1
    %p106 = scmp.ne.s32.totalorder %s101, %s103
    %p107 = scmp.eq.s32.totalorder %s11, 0
    %p108 = por %p106, %p107
    %p109 = scmp.ne.s32.totalorder %s101, %s103
    %p110 = scmp.eq.s32.totalorder %s16, 1
    %p111 = por %p109, %p110
    %p112 = scmp.ne.s32.totalorder %s103, %s104
    %p113 = scmp.eq.s32.totalorder %s16, 0
    %p114 = por %p112, %p113
    %p115 = scmp.ne.s32.totalorder %s103, %s104
    %p116 = scmp.eq.s32.totalorder %s17, 1
    %p117 = por %p115, %p116
    %p119 = scmp.ne.s32.totalorder %s104, %s118
    %p120 = scmp.eq.s32.totalorder %s17, 0
    %p121 = por %p119, %p120
    %s123 = sadd.s32 %s122, 1
    %p126 = scmp.eq.s32.totalorder %s11, 1
    %p127 = scmp.ne.s32.totalorder %s122, %s124
    %p128 = scmp.eq.s32.totalorder %s11, 0
    %p129 = por %p127, %p128
    %p130 = scmp.ne.s32.totalorder %s122, %s124
    %p131 = scmp.eq.s32.totalorder %s16, 1
    %p132 = por %p130, %p131
    %p133 = scmp.ne.s32.totalorder %s124, %s125
    %p134 = scmp.eq.s32.totalorder %s16, 0
    %p135 = por %p133, %p134
    %p136 = scmp.ne.s32.totalorder %s124, %s125
    %p137 = scmp.eq.s32.totalorder %s17, 1
    %p138 = por %p136, %p137
    %p140 = scmp.ne.s32.totalorder %s125, %s139
    %p141 = scmp.eq.s32.totalorder %s17, 0
    %p142 = por %p140, %p141
    %s143 = ssub.s32 %s18, %s30
    %s144 = ssub.s32 %s19, %s26
    %s145 = sor.u32 %s143, %s144
    %p146 = scmp.eq.s32.totalorder %s145, 0
    %s148 = sadd.s32 %s147, 1
    %s149 = scalar_select %p146, %s147, %s148
    %p152 = pneg %p146
    %p153 = scmp.eq.s32.totalorder %s11, 1
    %p154 = por %p152, %p153
    %p155 = scmp.ne.s32.totalorder %s147, %s150
    %p156 = scmp.eq.s32.totalorder %s11, 0
    %p157 = por %p155, %p156
    %p158 = scmp.ne.s32.totalorder %s147, %s150
    %p159 = scmp.eq.s32.totalorder %s16, 1
    %p160 = por %p158, %p159
    %p161 = scmp.ne.s32.totalorder %s150, %s151
    %p162 = scmp.eq.s32.totalorder %s16, 0
    %p163 = por %p161, %p162
    %p164 = scmp.ne.s32.totalorder %s150, %s151
    %p165 = scmp.eq.s32.totalorder %s17, 1
    %p166 = por %p164, %p165
    %p168 = scmp.ne.s32.totalorder %s151, %s167
    %p169 = scmp.eq.s32.totalorder %s17, 0
    %p170 = por %p168, %p169
    %p171 = scmp.le.s32.totalorder 1, %s11
    %p172 = scmp.lt.s32.totalorder %s11, 3
    %p173 = pnand %p171, %p172
    %p174 = pneg %p173
    // Predicated region
    $region9: #{output_layer_forward.1} parent=5 // pred_check
      _
    $region10: #{output_layer_forward.1} parent=5 // pred_check_branch
      %176 = sbr.rel (%p173) target = $region12
    $region11: #{output_layer_forward.1} parent=5 // pred_region
      %s177 = ssub.s32 %s11, 1
      // Predicated region
      $region13: #{output_layer_forward.1} parent=11 // pred_check
        %p178 = pneg %p72
      $region14: #{output_layer_forward.1} parent=11 // pred_check_branch
        %180 = sbr.rel (%p178) target = $region16
      $region15: #{output_layer_forward.1} parent=11 // pred_region
        _
      $region16: #{output_layer_forward.1} parent=11 // pred_fallthru
        _
      // Predicated region
      $region17: #{output_layer_forward.1} parent=11 // pred_check
        %p181 = pneg %p93
      $region18: #{output_layer_forward.1} parent=11 // pred_check_branch
        %183 = sbr.rel (%p181) target = $region20
      $region19: #{output_layer_forward.1} parent=11 // pred_region
        _
      $region20: #{output_layer_forward.1} parent=11 // pred_fallthru
        _
      // Predicated region
      $region21: #{output_layer_forward.1} parent=11 // pred_check
        %p184 = pneg %p114
      $region22: #{output_layer_forward.1} parent=11 // pred_check_branch
        %186 = sbr.rel (%p184) target = $region24
      $region23: #{output_layer_forward.1} parent=11 // pred_region
        _
      $region24: #{output_layer_forward.1} parent=11 // pred_fallthru
        _
      // Predicated region
      $region25: #{output_layer_forward.1} parent=11 // pred_check
        %p187 = pneg %p135
      $region26: #{output_layer_forward.1} parent=11 // pred_check_branch
        %189 = sbr.rel (%p187) target = $region28
      $region27: #{output_layer_forward.1} parent=11 // pred_region
        _
      $region28: #{output_layer_forward.1} parent=11 // pred_fallthru
        _
    $region12: #{output_layer_forward.1} parent=5 // pred_fallthru
      _
    %p190 = scmp.lt.s32.totalorder %s11, 2
    // Predicated region
    $region29: #{output_layer_forward.1} parent=5 // pred_check
      %p191 = pneg %p190
    $region30: #{output_layer_forward.1} parent=5 // pred_check_branch
      %193 = sbr.rel (%p191) target = $region32
    $region31: #{output_layer_forward.1} parent=5 // pred_region
      // Predicated region
      $region33: #{output_layer_forward.1} parent=31 // pred_check
        %p194 = pneg %p45
      $region34: #{output_layer_forward.1} parent=31 // pred_check_branch
        %196 = sbr.rel (%p194) target = $region36
      $region35: #{output_layer_forward.1} parent=31 // pred_region
        %s197 = smul.u32 16, %s19
        %p198 = scmp.lt.s32.totalorder %s18, 1
        %s199 = scalar_select %p198, %s18, 1
        %p200 = scmp.lt.s32.totalorder %s197, 15
        %s201 = scalar_select %p200, %s197, 15
        %s202 = smul.addr %s199, 16
        %s203 = sadd.s32 %s201, %s202
        %s204 = smul.addr %s203, 4
        %s205 = scalar_lea.vmem %s0, %s204
        %s206 = smul.u32 16, %s19
      $region36: #{output_layer_forward.1} parent=31 // pred_fallthru
        _
    $region32: #{output_layer_forward.1} parent=5 // pred_fallthru
      _
    %p207 = scmp.le.s32.totalorder 1, %s11
    %p208 = scmp.lt.s32.totalorder %s11, 3
    %p209 = pnand %p207, %p208
    %p210 = pneg %p209
    // Predicated region
    $region37: #{output_layer_forward.1} parent=5 // pred_check
      _
    $region38: #{output_layer_forward.1} parent=5 // pred_check_branch
      %212 = sbr.rel (%p209) target = $region40
    $region39: #{output_layer_forward.1} parent=5 // pred_region
      %s213 = ssub.s32 %s11, 1
      %s214 = smul.u32 16, %s21
      %p215 = scmp.lt.s32.totalorder %s20, 1
      %s216 = scalar_select %p215, %s20, 1
      %p217 = scmp.lt.s32.totalorder %s214, 15
      %s218 = scalar_select %p217, %s214, 15
      %s219 = smul.addr %s216, 16
      %s220 = sadd.s32 %s218, %s219
      %s221 = smul.addr %s220, 4
      %s222 = scalar_lea.vmem %s0, %s221
      %p223 = pneg %p51
      %p224 = pneg %p48
      %p225 = pneg %p72
      %p226 = pneg %p69
      %p227 = pneg %p93
      %p228 = pneg %p90
      %p229 = pneg %p114
      %p230 = pneg %p111
      %p231 = pneg %p135
      %p232 = pneg %p132
      %p233 = pneg %p163
      %p234 = pneg %p160
      %p235 = scmp.lt.s32.totalorder %s20, 1
      %s236 = scalar_select %p235, %s20, 1
      %p237 = scmp.lt.s32.totalorder %s21, 0
      %s238 = scalar_select %p237, %s21, 0
      %s239 = smul.addr %s236, 2
      %s240 = sadd.s32 %s238, %s239
      %s241 = smul.addr %s240, 8
      %s242 = scalar_lea.vmem %s5, %s241
      %s243 = smul.u32 16, %s21
      %p244 = scmp.lt.s32.totalorder %s20, 1
      %s245 = scalar_select %p244, %s20, 1
      %p246 = scmp.lt.s32.totalorder %s243, 15
      %s247 = scalar_select %p246, %s243, 15
      %s248 = smul.addr %s245, 16
      %s249 = sadd.s32 %s247, %s248
      %s250 = smul.addr %s249, 4
      %s251 = scalar_lea.vmem %s0, %s250
      %s252 = smul.u32 16, %s21
      %p253 = scmp.lt.s32.totalorder %s20, 1
      %s254 = scalar_select %p253, %s20, 1
      %p255 = scmp.lt.s32.totalorder %s21, 0
      %s256 = scalar_select %p255, %s21, 0
      %s257 = smul.addr %s254, 2
      %s258 = sadd.s32 %s256, %s257
      %s259 = smul.addr %s258, 8
      %s260 = scalar_lea.vmem %s5, %s259
      %v262 = vld [vmem:[%s251] sm:$0xf]
      %v263 = vld [vmem:[%s251 + $0x4] sm:$0xf]
      %v264 = vld [vmem:[%s251 + $0x8] sm:$0xf]
      %v265 = vld [vmem:[%s251 + $0xc] sm:$0xf]
      %v266 = vld [vmem:[%s251 + $0x10] sm:$0xf]
      %v267 = vld [vmem:[%s251 + $0x14] sm:$0xf]
      %v268 = vld [vmem:[%s251 + $0x18] sm:$0xf]
      %v269 = vld [vmem:[%s251 + $0x1c] sm:$0xf]
      %v270 = vld [vmem:[%s251 + $0x20] sm:$0xf]
      %v271 = vld [vmem:[%s251 + $0x24] sm:$0xf]
      %v272 = vld [vmem:[%s251 + $0x28] sm:$0xf]
      %v273 = vld [vmem:[%s251 + $0x2c] sm:$0xf]
      %v274 = vld [vmem:[%s251 + $0x30] sm:$0xf]
      %v275 = vld [vmem:[%s251 + $0x34] sm:$0xf]
      %v276 = vld [vmem:[%s251 + $0x38] sm:$0xf]
      %v277 = vld [vmem:[%s251 + $0x3c] sm:$0xf]
      %v278 = vld [vmem:[%s1] sm:$0xf]
      %v279 = vld [vmem:[%s1 + $0x4] sm:$0xf]
      %v280 = vld [vmem:[%s1 + $0x8] sm:$0xf]
      %v281 = vld [vmem:[%s1 + $0xc] sm:$0xf]
      %v282 = vld [vmem:[%s1 + $0x10] sm:$0xf]
      %v283 = vld [vmem:[%s1 + $0x14] sm:$0xf]
      %v284 = vld [vmem:[%s1 + $0x18] sm:$0xf]
      %v285 = vld [vmem:[%s1 + $0x1c] sm:$0xf]
      %v286 = vld [vmem:[%s1 + $0x20] sm:$0xf]
      %v287 = vld [vmem:[%s1 + $0x24] sm:$0xf]
      %v288 = vld [vmem:[%s1 + $0x28] sm:$0xf]
      %v289 = vld [vmem:[%s1 + $0x2c] sm:$0xf]
      %v290 = vld [vmem:[%s1 + $0x30] sm:$0xf]
      %v291 = vld [vmem:[%s1 + $0x34] sm:$0xf]
      %v292 = vld [vmem:[%s1 + $0x38] sm:$0xf]
      %v293 = vld [vmem:[%s1 + $0x3c] sm:$0xf]
      %v294 = vld [vmem:[%s2] sm:$0x1]
      %v296 = vlaneseq
      %v297 = vshrl.u32 %v296, 7
      %v298 = vsub.s32 0, %v297
      %v299 = vrot.slane %v294, %v298
      %v317 = vunpack.c.l.b16 %v262
      %v318 = vunpack.c.l.b16 %v263
      %v319 = vunpack.c.l.b16 %v264
      %v320 = vunpack.c.l.b16 %v265
      %v321 = vunpack.c.l.b16 %v266
      %v322 = vunpack.c.l.b16 %v267
      %v323 = vunpack.c.l.b16 %v268
      %v324 = vunpack.c.l.b16 %v269
      %v325 = vunpack.c.l.b16 %v270
      %v326 = vunpack.c.l.b16 %v271
      %v327 = vunpack.c.l.b16 %v272
      %v328 = vunpack.c.l.b16 %v273
      %v329 = vunpack.c.l.b16 %v274
      %v330 = vunpack.c.l.b16 %v275
      %v331 = vunpack.c.l.b16 %v276
      %v332 = vunpack.c.l.b16 %v277
      %v333 = vpack.c.b16 %v318, %v317
      %v334 = vpack.c.b16 %v320, %v319
      %v335 = vpack.c.b16 %v322, %v321
      %v336 = vpack.c.b16 %v324, %v323
      %v337 = vpack.c.b16 %v326, %v325
      %v338 = vpack.c.b16 %v328, %v327
      %v339 = vpack.c.b16 %v330, %v329
      %v340 = vpack.c.b16 %v332, %v331
      %v365 = vunpack.c.l.b16 %v278
      %v366 = vunpack.c.l.b16 %v279
      %v367 = vunpack.c.l.b16 %v280
      %v368 = vunpack.c.l.b16 %v281
      %v369 = vunpack.c.l.b16 %v282
      %v370 = vunpack.c.l.b16 %v283
      %v371 = vunpack.c.l.b16 %v284
      %v372 = vunpack.c.l.b16 %v285
      %v373 = vunpack.c.l.b16 %v286
      %v374 = vunpack.c.l.b16 %v287
      %v375 = vunpack.c.l.b16 %v288
      %v376 = vunpack.c.l.b16 %v289
      %v377 = vunpack.c.l.b16 %v290
      %v378 = vunpack.c.l.b16 %v291
      %v379 = vunpack.c.l.b16 %v292
      %v380 = vunpack.c.l.b16 %v293
      %v381 = vpack.c.b16 %v366, %v365
      %v382 = vpack.c.b16 %v368, %v367
      %v383 = vpack.c.b16 %v370, %v369
      %v384 = vpack.c.b16 %v372, %v371
      %v385 = vpack.c.b16 %v374, %v373
      %v386 = vpack.c.b16 %v376, %v375
      %v387 = vpack.c.b16 %v378, %v377
      %v388 = vpack.c.b16 %v380, %v379
      %397 = vmatprep.subr.bf16.mxu0 0
      %398 = vmatpush1.bf16.msra.mxu0 %v381
      %399 = vmatprep.subr.bf16.mxu0 0
      %400 = vmatpush1.bf16.msra.mxu0 %v382
      %401 = vmatprep.subr.bf16.mxu0 0
      %402 = vmatpush1.bf16.msra.mxu0 %v383
      %403 = vmatprep.subr.bf16.mxu0 0
      %404 = vmatpush1.bf16.msra.mxu0 %v384
      %405 = vmatprep.subr.bf16.mxu0 0
      %406 = vmatpush1.bf16.msra.mxu0 %v385
      %407 = vmatprep.subr.bf16.mxu0 0
      %408 = vmatpush1.bf16.msra.mxu0 %v386
      %409 = vmatprep.subr.bf16.mxu0 0
      %410 = vmatpush1.bf16.msra.mxu0 %v387
      %411 = vmatprep.subr.bf16.mxu0 0
      %412 = vmatpush1.bf16.msra.mxu0 %v388
      %413 = vmatprep.subr.bf16.mxu0 0
      %414 = vmatpush1.bf16.msra.mxu0 0
      %415 = vmatprep.subr.bf16.mxu0 0
      %416 = vmatpush1.bf16.msra.mxu0 0
      %417 = vmatprep.subr.bf16.mxu0 0
      %418 = vmatpush1.bf16.msra.mxu0 0
      %419 = vmatprep.subr.bf16.mxu0 0
      %420 = vmatpush1.bf16.msra.mxu0 0
      %421 = vmatprep.subr.bf16.mxu0 0
      %422 = vmatpush1.bf16.msra.mxu0 0
      %423 = vmatprep.subr.bf16.mxu0 0
      %424 = vmatpush1.bf16.msra.mxu0 0
      %425 = vmatprep.subr.bf16.mxu0 0
      %426 = vmatpush1.bf16.msra.mxu0 0
      %427 = vmatprep.subr.bf16.mxu0 0
      %428 = vmatpush1.bf16.msra.mxu0 0
      %429 = vmatprep.mubr.bf16.mxu0 0
      %430 = vmatmul.mubr.bf16.gmra.mrb[0].mxu0 %v333
      %v431 = vpop.f32.mrb[0].mxu0
      %v432 = vadd.f32 %v299, %v431
      %v433 = vpop.f32.mrb[0].mxu0
      %v434 = vpop.f32.mrb[0].mxu0
      %v435 = vadd.f32 %v299, %v434
      %v436 = vpop.f32.mrb[0].mxu0
      %437 = vmatprep.mubr.bf16.mxu0 0
      %438 = vmatmul.mubr.bf16.gmra.mrb[0].mxu0 %v334
      %v439 = vpop.f32.mrb[0].mxu0
      %v440 = vadd.f32 %v299, %v439
      %v441 = vpop.f32.mrb[0].mxu0
      %v442 = vpop.f32.mrb[0].mxu0
      %v443 = vadd.f32 %v299, %v442
      %v444 = vpop.f32.mrb[0].mxu0
      %445 = vmatprep.mubr.bf16.mxu0 0
      %446 = vmatmul.mubr.bf16.gmra.mrb[0].mxu0 %v335
      %v447 = vpop.f32.mrb[0].mxu0
      %v448 = vadd.f32 %v299, %v447
      %v449 = vpop.f32.mrb[0].mxu0
      %v450 = vpop.f32.mrb[0].mxu0
      %v451 = vadd.f32 %v299, %v450
      %v452 = vpop.f32.mrb[0].mxu0
      %453 = vmatprep.mubr.bf16.mxu0 0
      %454 = vmatmul.mubr.bf16.gmra.mrb[0].mxu0 %v336
      %v455 = vpop.f32.mrb[0].mxu0
      %v456 = vadd.f32 %v299, %v455
      %v457 = vpop.f32.mrb[0].mxu0
      %v458 = vpop.f32.mrb[0].mxu0
      %v459 = vadd.f32 %v299, %v458
      %v460 = vpop.f32.mrb[0].mxu0
      %461 = vmatprep.mubr.bf16.mxu0 0
      %462 = vmatmul.mubr.bf16.gmra.mrb[0].mxu0 %v337
      %v463 = vpop.f32.mrb[0].mxu0
      %v464 = vadd.f32 %v299, %v463
      %v465 = vpop.f32.mrb[0].mxu0
      %v466 = vpop.f32.mrb[0].mxu0
      %v467 = vadd.f32 %v299, %v466
      %v468 = vpop.f32.mrb[0].mxu0
      %469 = vmatprep.mubr.bf16.mxu0 0
      %470 = vmatmul.mubr.bf16.gmra.mrb[0].mxu0 %v338
      %v471 = vpop.f32.mrb[0].mxu0
      %v472 = vadd.f32 %v299, %v471
      %v473 = vpop.f32.mrb[0].mxu0
      %v474 = vpop.f32.mrb[0].mxu0
      %v475 = vadd.f32 %v299, %v474
      %v476 = vpop.f32.mrb[0].mxu0
      %477 = vmatprep.mubr.bf16.mxu0 0
      %478 = vmatmul.mubr.bf16.gmra.mrb[0].mxu0 %v339
      %v479 = vpop.f32.mrb[0].mxu0
      %v480 = vadd.f32 %v299, %v479
      %v481 = vpop.f32.mrb[0].mxu0
      %v482 = vpop.f32.mrb[0].mxu0
      %v483 = vadd.f32 %v299, %v482
      %v484 = vpop.f32.mrb[0].mxu0
      %485 = vmatprep.mubr.bf16.mxu0 0
      %486 = vmatmul.mubr.bf16.gmra.mrb[0].mxu0 %v340
      %v487 = vpop.f32.mrb[0].mxu0
      %v488 = vadd.f32 %v299, %v487
      %v489 = vpop.f32.mrb[0].mxu0
      %v490 = vpop.f32.mrb[0].mxu0
      %v491 = vadd.f32 %v299, %v490
      %v492 = vpop.f32.mrb[0].mxu0
      %493 = vdwg.mxu0
      %v494 = vmax.f32 %v432, 0.0
      %v495 = vmax.f32 %v435, 0.0
      %v496 = vmax.f32 %v440, 0.0
      %v497 = vmax.f32 %v443, 0.0
      %v498 = vmax.f32 %v448, 0.0
      %v499 = vmax.f32 %v451, 0.0
      %v500 = vmax.f32 %v456, 0.0
      %v501 = vmax.f32 %v459, 0.0
      %v502 = vmax.f32 %v464, 0.0
      %v503 = vmax.f32 %v467, 0.0
      %v504 = vmax.f32 %v472, 0.0
      %v505 = vmax.f32 %v475, 0.0
      %v506 = vmax.f32 %v480, 0.0
      %v507 = vmax.f32 %v483, 0.0
      %v508 = vmax.f32 %v488, 0.0
      %v509 = vmax.f32 %v491, 0.0
      %v510 = vld [vmem:[%s3] sm:$0xff]
      %v511 = vld [vmem:[%s3 + $0x8] sm:$0xf]
      %v512 = vld [vmem:[%s4] sm:$0xff]
      %v513 = vld [vmem:[%s4 + $0x8] sm:$0xf]
      %515 = vset.pattern.permute.xlu0 0
      %516 = vperm.xlu0 %515, %v512
      %v517 = vpop.permute.xlu0 %516
      %520 = vset.pattern.permute.xlu0 0
      %521 = vperm.xlu0 %520, %v513
      %v522 = vpop.permute.xlu0 %521
      %524 = vmatprep.subr.mxu0 0.0
      %525 = vmatpush1.xpose.msra.mxu0 %v494
      %526 = vmatprep.subr.mxu0 0.0
      %527 = vmatpush1.xpose.msra.mxu0 %v495
      %528 = vmatprep.subr.mxu0 0.0
      %529 = vmatpush1.xpose.msra.mxu0 %v496
      %530 = vmatprep.subr.mxu0 0.0
      %531 = vmatpush1.xpose.msra.mxu0 %v497
      %532 = vmatprep.subr.mxu0 0.0
      %533 = vmatpush1.xpose.msra.mxu0 %v498
      %534 = vmatprep.subr.mxu0 0.0
      %535 = vmatpush1.xpose.msra.mxu0 %v499
      %536 = vmatprep.subr.mxu0 0.0
      %537 = vmatpush1.xpose.msra.mxu0 %v500
      %538 = vmatprep.subr.mxu0 0.0
      %539 = vmatpush1.xpose.msra.mxu0 %v501
      %540 = vmatprep.subr.mxu0 0.0
      %541 = vmatpush1.xpose.msra.mxu0 %v502
      %542 = vmatprep.subr.mxu0 0.0
      %543 = vmatpush1.xpose.msra.mxu0 %v503
      %544 = vmatprep.subr.mxu0 0.0
      %545 = vmatpush1.xpose.msra.mxu0 %v504
      %546 = vmatprep.subr.mxu0 0.0
      %547 = vmatpush1.xpose.msra.mxu0 %v505
      %548 = vmatprep.subr.mxu0 0.0
      %549 = vmatpush1.xpose.msra.mxu0 %v506
      %550 = vmatprep.subr.mxu0 0.0
      %551 = vmatpush1.xpose.msra.mxu0 %v507
      %552 = vmatprep.subr.mxu0 0.0
      %553 = vmatpush1.xpose.msra.mxu0 %v508
      %554 = vmatprep.subr.mxu0 0.0
      %555 = vmatpush1.xpose.msra.mxu0 %v509
      %556 = vmatprep.subr.mxu0 0.0
      %557 = vmatpush1.xpose.msra.mxu0 0.0
      %558 = vmatprep.subr.mxu0 0.0
      %559 = vmatpush1.xpose.msra.mxu0 0.0
      %560 = vmatprep.subr.mxu0 0.0
      %561 = vmatpush1.xpose.msra.mxu0 0.0
      %562 = vmatprep.subr.mxu0 0.0
      %563 = vmatpush1.xpose.msra.mxu0 0.0
      %564 = vmatprep.subr.mxu0 0.0
      %565 = vmatpush1.xpose.msra.mxu0 0.0
      %566 = vmatprep.subr.mxu0 0.0
      %567 = vmatpush1.xpose.msra.mxu0 0.0
      %568 = vmatprep.subr.mxu0 0.0
      %569 = vmatpush1.xpose.msra.mxu0 0.0
      %570 = vmatprep.subr.mxu0 0.0
      %571 = vmatpush1.xpose.msra.mxu0 0.0
      %572 = vmatprep.subr.mxu0 0.0
      %573 = vmatpush1.xpose.msra.mxu0 0.0
      %574 = vmatprep.subr.mxu0 0.0
      %575 = vmatpush1.xpose.msra.mxu0 0.0
      %576 = vmatprep.subr.mxu0 0.0
      %577 = vmatpush1.xpose.msra.mxu0 0.0
      %578 = vmatprep.subr.mxu0 0.0
      %579 = vmatpush1.xpose.msra.mxu0 0.0
      %580 = vmatprep.subr.mxu0 0.0
      %581 = vmatpush1.xpose.msra.mxu0 0.0
      %582 = vmatprep.subr.mxu0 0.0
      %583 = vmatpush1.xpose.msra.mxu0 0.0
      %584 = vmatprep.subr.mxu0 0.0
      %585 = vmatpush1.xpose.msra.mxu0 0.0
      %586 = vmatprep.subr.mxu0 0.0
      %587 = vmatpush1.xpose.msra.mxu0 0.0
      %588 = vmatprep.mubr.f32.mxu0 0.0
      %589 = vmatmul.mubr.f32.gmra.mrb[0].mxu0 %v510
      %v590 = vpop.f32.mrb[0].mxu0
      %v591 = vadd.f32 %v517, %v590
      %v592 = vpop.f32.mrb[0].mxu0
      %593 = vmatprep.mubr.f32.mxu0 0.0
      %594 = vmatmul.mubr.f32.gmra.mrb[0].mxu0 %v511
      %v595 = vpop.f32.mrb[0].mxu0
      %v596 = vadd.f32 %v522, %v595
      %v597 = vpop.f32.mrb[0].mxu0
      %598 = vdwg.mxu0
      %599 = vst [vmem:[%s260] sm:$0xff] %v591
      %600 = vst [vmem:[%s260 + $0x8] sm:$0xf] %v596
      %p601 = scmp.lt.s32.totalorder %s20, 1
      %s602 = scalar_select %p601, %s20, 1
      %p603 = scmp.lt.s32.totalorder %s21, 0
      %s604 = scalar_select %p603, %s21, 0
      %s605 = smul.addr %s602, 2
      %s606 = sadd.s32 %s604, %s605
      %s607 = smul.addr %s606, 8
      %s608 = scalar_lea.vmem %s5, %s607
      // Predicated region
      $region41: #{output_layer_forward.1} parent=39 // pred_check
        %p609 = pneg %p160
      $region42: #{output_layer_forward.1} parent=39 // pred_check_branch
        %611 = sbr.rel (%p609) target = $region44
      $region43: #{output_layer_forward.1} parent=39 // pred_region
        _
      $region44: #{output_layer_forward.1} parent=39 // pred_fallthru
        _
    $region40: #{output_layer_forward.1} parent=5 // pred_fallthru
      _
    %p612 = scmp.le.s32.totalorder 2, %s11
    // Predicated region
    $region45: #{output_layer_forward.1} parent=5 // pred_check
      %p613 = pneg %p612
    $region46: #{output_layer_forward.1} parent=5 // pred_check_branch
      %615 = sbr.rel (%p613) target = $region48
    $region47: #{output_layer_forward.1} parent=5 // pred_region
      %s616 = ssub.s32 %s11, 2
      // Predicated region
      $region49: #{output_layer_forward.1} parent=47 // pred_check
        %p617 = pneg %p166
      $region50: #{output_layer_forward.1} parent=47 // pred_check_branch
        %619 = sbr.rel (%p617) target = $region52
      $region51: #{output_layer_forward.1} parent=47 // pred_region
        %p620 = scmp.lt.s32.totalorder %s22, 1
        %s621 = scalar_select %p620, %s22, 1
        %p622 = scmp.lt.s32.totalorder %s23, 0
        %s623 = scalar_select %p622, %s23, 0
        %s624 = smul.addr %s621, 2
        %s625 = sadd.s32 %s623, %s624
        %s626 = smul.addr %s625, 8
        %s627 = scalar_lea.vmem %s5, %s626
      $region52: #{output_layer_forward.1} parent=47 // pred_fallthru
        _
    $region48: #{output_layer_forward.1} parent=5 // pred_fallthru
      _
  $region6: #{output_layer_forward.1} parent=0 // loop_footer
    %s15 = sadd.s32 1, %s11
  $region7: #{output_layer_forward.1} parent=0 // loop_footer_branch
    %10 = sbr.rel target = $region3
  $region8: #{output_layer_forward.1} parent=0 // loop_exit
    _

</llo_original>
